<compile_context>
chip_gen: v7x
topology: tpu7x:2x2x1
jax: 0.10.0
libtpu: 0.0.40
codegen_flags: <defaults>
</compile_context>

<pallas_src>
import functools

import jax
import jax.numpy as jnp
from jax import lax
from jax.experimental import pallas as pl
from jax.experimental.pallas import tpu as pltpu


LEAKY_SLOPE = 0.01   # nn.LeakyReLU default
BN_EPS = 1e-5        # nn.BatchNorm1d default
LANE = 128
SUBLANE = 8

FUSED_SCRATCH_BUDGET = 24 * 1024 * 1024   # bytes; safe on v5e/v6e/v7x
VMEM_LIMIT = 48 * 1024 * 1024             # scoped VMEM limit requested per call


def _round_up(x, m):
    return (x + m - 1) // m * m


def _leaky_relu(x):
    return jnp.where(x > 0, x, LEAKY_SLOPE * x)


def _embed_linear1(idx, wcat_ref):
    """Fused embedding-sum + Linear1 + bias + LeakyReLU via one one-hot matmul.

    idx: (tn, 2) int32 where column 1 is already offset by the bb1 vocab size, so
    both lookups hit disjoint rows of the folded (vocab, h1) table.
    """
    tn = idx.shape[0]
    vcp = wcat_ref.shape[0]
    col = lax.broadcasted_iota(jnp.int32, (tn, vcp), 1)
    oh = jnp.logical_or(col == idx[:, 0:1], col == idx[:, 1:2]).astype(jnp.float32)
    a = jnp.dot(oh, wcat_ref[...], preferred_element_type=jnp.float32)
    return _leaky_relu(a)


def _tile_stats(act, tile_idx, tn, n_valid):
    """(8, 2H) partial stats for one (tn, H) tile in ONE MXU push.

    Row 0, lanes [:H] = sum over valid rows, lanes [H:] = sum of squares.
    Zero-padded batch rows are masked out so they never pollute the BN stats.
    """
    col = tile_idx * tn + lax.broadcasted_iota(jnp.int32, (SUBLANE, tn), 1)
    row = lax.broadcasted_iota(jnp.int32, (SUBLANE, tn), 0)
    lhs = jnp.where((row == 0) & (col < n_valid), 1.0, 0.0)
    rhs = jnp.concatenate([act, act * act], axis=1)          # (tn, 2H)
    return jnp.dot(lhs, rhs, preferred_element_type=jnp.float32)


def _bn_scale_shift(stats, gb, n_valid):
    """Fold BatchNorm (training-mode batch stats) into per-feature scale/shift."""
    h = gb.shape[1]
    inv_n = 1.0 / float(n_valid)
    mean = stats[0:1, :h] * inv_n
    var = jnp.maximum(stats[0:1, h:] * inv_n - mean * mean, 0.0)   # biased var, >= 0
    inv_std = lax.rsqrt(var + BN_EPS)
    scale = gb[0:1, :] * inv_std                                   # gamma / sqrt(var+eps)
    shift = gb[1:2, :] - mean * scale                              # beta - mean*scale
    return scale, shift


# --------------------------------------------------------------------------- #
# Fused single-call kernel: a1/a2 stay in VMEM scratch, three in-kernel sweeps.
# --------------------------------------------------------------------------- #
def _fused_kernel(idx_ref, wcat_ref, gb1_ref, w2_ref, b2_ref, gb2_ref,
                  o_ref, a1_scr, a2_scr, s1_scr, s2_scr,
                  *, n_valid, tn, n_tiles):
    hid_out = o_ref.shape[1]
    s1_scr[...] = jnp.zeros_like(s1_scr)
    s2_scr[...] = jnp.zeros_like(s2_scr)

    # Sweep 1: embedding-fused Linear1 + LeakyReLU -> a1 scratch; accumulate stats1.
    @pl.loop(0, n_tiles)
    def _sweep1(t):
        r0 = pl.multiple_of(t * tn, 8)
        a1 = _embed_linear1(idx_ref[pl.ds(r0, tn), :], wcat_ref)
        a1_scr[pl.ds(r0, tn), :] = a1
        s1_scr[...] += _tile_stats(a1, t, tn, n_valid)

    scale1, shift1 = _bn_scale_shift(s1_scr[...], gb1_ref[...], n_valid)

    # Sweep 2: BN1 (+Dropout=id) + Linear2 + LeakyReLU -> a2 scratch; stats2.
    @pl.loop(0, n_tiles)
    def _sweep2(t):
        r0 = pl.multiple_of(t * tn, 8)
        h = a1_scr[pl.ds(r0, tn), :] * scale1 + shift1
        a2 = _leaky_relu(
            jnp.dot(h, w2_ref[...], preferred_element_type=jnp.float32) + b2_ref[...])
        a2_scr[pl.ds(r0, tn), :] = a2
        s2_scr[...] += _tile_stats(a2, t, tn, n_valid)

    scale2, shift2 = _bn_scale_shift(s2_scr[...], gb2_ref[...], n_valid)

    # Sweep 3: BN2 (+Dropout=id) -> output at logical lane width.
    @pl.loop(0, n_tiles)
    def _sweep3(t):
        r0 = pl.multiple_of(t * tn, 8)
        y = a2_scr[pl.ds(r0, tn), :] * scale2 + shift2
        o_ref[pl.ds(r0, tn), :] = y[:, :hid_out]


# --------------------------------------------------------------------------- #
# Streaming fallback, pass A: stats1 only (no a1 round-trip).
# --------------------------------------------------------------------------- #
def _stats1_kernel(idx_ref, wcat_ref, s1_ref, *, n_valid, tn):
    i = pl.program_id(0)

    @pl.when(i == 0)
    def _():
        s1_ref[...] = jnp.zeros_like(s1_ref)

    a1 = _embed_linear1(idx_ref[...], wcat_ref)
    s1_ref[...] += _tile_stats(a1, i, tn, n_valid)


# --------------------------------------------------------------------------- #
# Streaming fallback, pass B: recompute a1, BN1 + Linear2 + LeakyReLU, stats2.
# --------------------------------------------------------------------------- #
def _bn1_linear2_kernel(idx_ref, wcat_ref, s1_ref, gb1_ref, w2_ref, b2_ref,
                        a2_ref, s2_ref, *, n_valid, tn):
    i = pl.program_id(0)

    @pl.when(i == 0)
    def _():
        s2_ref[...] = jnp.zeros_like(s2_ref)

    a1 = _embed_linear1(idx_ref[...], wcat_ref)
    scale1, shift1 = _bn_scale_shift(s1_ref[...], gb1_ref[...], n_valid)
    h = a1 * scale1 + shift1
    a2 = _leaky_relu(
        jnp.dot(h, w2_ref[...], preferred_element_type=jnp.float32) + b2_ref[...])
    a2_ref[...] = a2
    s2_ref[...] += _tile_stats(a2, i, tn, n_valid)


# --------------------------------------------------------------------------- #
# Streaming fallback, pass C: BN2 -> output (no cross-tile dependence).
# --------------------------------------------------------------------------- #
def _bn2_kernel(a2_ref, s2_ref, gb2_ref, o_ref, *, n_valid):
    hid_out = o_ref.shape[1]
    scale2, shift2 = _bn_scale_shift(s2_ref[...], gb2_ref[...], n_valid)
    y = a2_ref[...] * scale2 + shift2
    o_ref[...] = y[:, :hid_out]


def _pad2(a, rows, cols):
    r, c = a.shape
    return jnp.pad(a, ((0, rows - r), (0, cols - c)))


def _const2d(shape):
    # Constant block index -> block stays resident (DMA'd once per call).
    return pl.BlockSpec(shape, lambda i: (0, 0))


@functools.partial(jax.jit, static_argnames=("tile_n", "force_streaming"))
def category_encoder_forward(input_features, params, *, tile_n=1024,
                             force_streaming=False):
    """input_features: int32 (N, 2); returns (N, enc_hidden_dim) float32."""
    bb1_tab = params["bb1_embed"]          # (bb1_vocab, emb_dim)
    rxn_tab = params["reaction_embed"]     # (reaction_vocab, emb_dim)
    w1, b1 = params["w1"], params["b1"]
    w2, b2 = params["w2"], params["b2"]

    n = input_features.shape[0]
    hid1 = w1.shape[1]
    hid2 = w2.shape[1]
    vb = bb1_tab.shape[0]
    vr = rxn_tab.shape[0]

    h1p = max(_round_up(hid1, LANE), LANE)
    h2p = max(_round_up(hid2, LANE), LANE)
    vcp = max(_round_up(vb + vr, LANE), LANE)

    # --- Fold embeddings + b1 into one (vocab, hid1) table (tiny XLA matmuls). ---
    wb = bb1_tab @ w1 + b1.reshape(1, -1)
    wr = rxn_tab @ w1
    wcat_p = _pad2(jnp.concatenate([wb, wr], axis=0), vcp, h1p)

    # Combined index: column 1 offset by vb so both lookups hit the folded table.
    cidx = jnp.stack([input_features[:, 0].astype(jnp.int32),
                      vb + input_features[:, 1].astype(jnp.int32)], axis=1)

    w2_p = _pad2(w2, h1p, h2p)
    b2_p = _pad2(b2.reshape(1, -1), 1, h2p)
    gb1_p = jnp.concatenate([_pad2(params["gamma1"].reshape(1, -1), 1, h1p),
                             _pad2(params["beta1"].reshape(1, -1), 1, h1p)], axis=0)
    gb2_p = jnp.concatenate([_pad2(params["gamma2"].reshape(1, -1), 1, h2p),
                             _pad2(params["beta2"].reshape(1, -1), 1, h2p)], axis=0)

    # Batch tiling.
    tn = _round_up(min(tile_n, _round_up(n, SUBLANE)), SUBLANE)
    np_rows = _round_up(n, tn)
    n_tiles = np_rows // tn
    idx_p = jnp.pad(cidx, ((0, np_rows - n), (0, 0)))

    fused_bytes = 4 * (np_rows * (h1p + h2p)            # a1/a2 scratch
                       + vcp * h1p + h1p * h2p          # resident weights
                       + np_rows * 2 + np_rows * hid2   # idx + output
                       + SUBLANE * 2 * (h1p + h2p))     # stats
    use_fused = (not force_streaming) and fused_bytes <= FUSED_SCRATCH_BUDGET

    if use_fused:
        # ---------------- Single fused call: zero intermediate HBM traffic. -----
        flops = (2 * np_rows * (vcp * h1p + h1p * h2p + 2 * (h1p + h2p))
                 + 6 * np_rows * (h1p + h2p))
        bytes_acc = 4 * (np_rows * 2 + vcp * h1p + h1p * h2p + 5 * (h1p + h2p)
                         + np_rows * hid2)
        out_p = pl.pallas_call(
            functools.partial(_fused_kernel, n_valid=n, tn=tn, n_tiles=n_tiles),
            out_shape=jax.ShapeDtypeStruct((np_rows, hid2), jnp.float32),
            grid_spec=pltpu.PrefetchScalarGridSpec(
                num_scalar_prefetch=0,
                grid=(1,),
                in_specs=[
                    _const2d((np_rows, 2)),
                    _const2d((vcp, h1p)), _const2d((2, h1p)),
                    _const2d((h1p, h2p)), _const2d((1, h2p)), _const2d((2, h2p)),
                ],
                out_specs=pl.BlockSpec((np_rows, hid2), lambda i: (0, 0)),
                scratch_shapes=[
                    pltpu.VMEM((np_rows, h1p), jnp.float32),
                    pltpu.VMEM((np_rows, h2p), jnp.float32),
                    pltpu.VMEM((SUBLANE, 2 * h1p), jnp.float32),
                    pltpu.VMEM((SUBLANE, 2 * h2p), jnp.float32),
                ]),
            compiler_params=pltpu.CompilerParams(
                dimension_semantics=("arbitrary",),
                vmem_limit_bytes=VMEM_LIMIT),
            cost_estimate=pl.CostEstimate(flops=flops, transcendentals=h1p + h2p,
                                          bytes_accessed=bytes_acc),
        )(idx_p, wcat_p, gb1_p, w2_p, b2_p, gb2_p)
        return out_p[:n] if np_rows != n else out_p

    # ---------------- Streaming fallback (large batches). ----------------------
    # Pass A: stats1 only (a1 never touches HBM).
    flops_a = 2 * np_rows * (vcp * h1p + 2 * h1p)
    bytes_a = 4 * (np_rows * 2 + vcp * h1p + SUBLANE * 2 * h1p)
    stats1 = pl.pallas_call(
        functools.partial(_stats1_kernel, n_valid=n, tn=tn),
        out_shape=jax.ShapeDtypeStruct((SUBLANE, 2 * h1p), jnp.float32),
        grid_spec=pltpu.PrefetchScalarGridSpec(
            num_scalar_prefetch=0,
            grid=(n_tiles,),
            in_specs=[pl.BlockSpec((tn, 2), lambda i: (i, 0)),
                      _const2d((vcp, h1p))],
            out_specs=_const2d((SUBLANE, 2 * h1p))),
        compiler_params=pltpu.CompilerParams(
            dimension_semantics=("arbitrary",),      # resident stats accumulator
            vmem_limit_bytes=VMEM_LIMIT),
        cost_estimate=pl.CostEstimate(flops=flops_a, transcendentals=0,
                                      bytes_accessed=bytes_a),
    )(idx_p, wcat_p)

    # Pass B: recompute a1, BN1 + Linear2 + LeakyReLU, accumulate stats2.
    flops_b = 2 * np_rows * (vcp * h1p + h1p * h2p + 2 * h2p) + 4 * np_rows * h1p
    bytes_b = 4 * (np_rows * 2 + vcp * h1p + h1p * h2p + 5 * h1p + h2p
                   + np_rows * h2p + SUBLANE * 2 * h2p)
    a2, stats2 = pl.pallas_call(
        functools.partial(_bn1_linear2_kernel, n_valid=n, tn=tn),
        out_shape=(jax.ShapeDtypeStruct((np_rows, h2p), jnp.float32),
                   jax.ShapeDtypeStruct((SUBLANE, 2 * h2p), jnp.float32)),
        grid_spec=pltpu.PrefetchScalarGridSpec(
            num_scalar_prefetch=0,
            grid=(n_tiles,),
            in_specs=[
                pl.BlockSpec((tn, 2), lambda i: (i, 0)),
                _const2d((vcp, h1p)), _const2d((SUBLANE, 2 * h1p)),
                _const2d((2, h1p)), _const2d((h1p, h2p)), _const2d((1, h2p)),
            ],
            out_specs=[
                pl.BlockSpec((tn, h2p), lambda i: (i, 0)),
                _const2d((SUBLANE, 2 * h2p)),
            ]),
        compiler_params=pltpu.CompilerParams(
            dimension_semantics=("arbitrary",),
            vmem_limit_bytes=VMEM_LIMIT),
        cost_estimate=pl.CostEstimate(flops=flops_b, transcendentals=h1p,
                                      bytes_accessed=bytes_b),
    )(idx_p, wcat_p, stats1, gb1_p, w2_p, b2_p)

    # Pass C: BN2, output written at logical lane width.
    flops_c = 4 * np_rows * h2p
    bytes_c = 4 * (np_rows * h2p + SUBLANE * 2 * h2p + 2 * h2p + np_rows * hid2)
    out_p = pl.pallas_call(
        functools.partial(_bn2_kernel, n_valid=n),
        out_shape=jax.ShapeDtypeStruct((np_rows, hid2), jnp.float32),
        grid_spec=pltpu.PrefetchScalarGridSpec(
            num_scalar_prefetch=0,
            grid=(n_tiles,),
            in_specs=[
                pl.BlockSpec((tn, h2p), lambda i: (i, 0)),
                _const2d((SUBLANE, 2 * h2p)), _const2d((2, h2p)),
            ],
            out_specs=pl.BlockSpec((tn, hid2), lambda i: (i, 0))),
        compiler_params=pltpu.CompilerParams(
            dimension_semantics=("parallel",),       # megacore on this pass
            vmem_limit_bytes=VMEM_LIMIT),
        cost_estimate=pl.CostEstimate(flops=flops_c, transcendentals=h2p,
                                      bytes_accessed=bytes_c),
    )(a2, stats2, gb2_p)

    return out_p[:n] if np_rows != n else out_p


def init_params(key, bb1_vocab_dim, reaction_vocab_dim, emb_dim, enc_hidden_dim):
    ks = jax.random.split(key, 8)
    hid1 = emb_dim * 2
    return {
        # nn.Embedding: N(0, 1)
        "bb1_embed": jax.random.normal(ks[0], (bb1_vocab_dim, emb_dim), jnp.float32),
        "reaction_embed": jax.random.normal(ks[1], (reaction_vocab_dim, emb_dim), jnp.float32),
        # Linear weights stored as (in, out) so kernels do x @ W + b
        "w1": jax.random.uniform(ks[2], (emb_dim, hid1), jnp.float32,
                                 -1.0 / emb_dim ** 0.5, 1.0 / emb_dim ** 0.5),
        "b1": jax.random.uniform(ks[3], (1, hid1), jnp.float32,
                                 -1.0 / emb_dim ** 0.5, 1.0 / emb_dim ** 0.5),
        "w2": jax.random.uniform(ks[4], (hid1, enc_hidden_dim), jnp.float32,
                                 -1.0 / hid1 ** 0.5, 1.0 / hid1 ** 0.5),
        "b2": jax.random.uniform(ks[5], (1, enc_hidden_dim), jnp.float32,
                                 -1.0 / hid1 ** 0.5, 1.0 / hid1 ** 0.5),
        # BatchNorm1d affine params (default gamma=1, beta=0)
        "gamma1": jnp.ones((1, hid1), jnp.float32),
        "beta1": jnp.zeros((1, hid1), jnp.float32),
        "gamma2": jnp.ones((1, enc_hidden_dim), jnp.float32),
        "beta2": jnp.zeros((1, enc_hidden_dim), jnp.float32),
    }


def _reference_forward(input_features, params):
    """Pure-JAX reference of the torch forward (training-mode BN, dropout=id)."""
    bb1 = jnp.take(params["bb1_embed"], input_features[:, 0], axis=0)
    rxn = jnp.take(params["reaction_embed"], input_features[:, 1], axis=0)
    h = bb1 + rxn
    h = h @ params["w1"] + params["b1"]
    h = jnp.where(h > 0, h, LEAKY_SLOPE * h)
    m, v = h.mean(0, keepdims=True), h.var(0, keepdims=True)
    h = (h - m) / jnp.sqrt(v + BN_EPS) * params["gamma1"] + params["beta1"]
    h = h @ params["w2"] + params["b2"]
    h = jnp.where(h > 0, h, LEAKY_SLOPE * h)
    m, v = h.mean(0, keepdims=True), h.var(0, keepdims=True)
    h = (h - m) / jnp.sqrt(v + BN_EPS) * params["gamma2"] + params["beta2"]
    return h


if __name__ == "__main__":
    bb1_vocab_dim = 16
    reaction_vocab_dim = 8
    emb_dim = 32
    enc_hidden_dim = 32

    key = jax.random.PRNGKey(0)
    k0, k1, kp, k2, k3 = jax.random.split(key, 5)
    params = init_params(kp, bb1_vocab_dim, reaction_vocab_dim, emb_dim, enc_hidden_dim)

    # Case 1: tiny batch -> fused single-call path, single internal tile.
    batch = 8
    feats = jnp.stack(
        [jax.random.randint(k0, (batch,), 0, bb1_vocab_dim, jnp.int32),
         jax.random.randint(k1, (batch,), 0, reaction_vocab_dim, jnp.int32)],
        axis=1)
    out = jax.block_until_ready(category_encoder_forward(feats, params))
    ref = _reference_forward(feats, params)
    assert out.shape == (batch, enc_hidden_dim), out.shape
    assert jnp.allclose(out, ref, atol=1e-3, rtol=1e-3), \
        f"max err {float(jnp.max(jnp.abs(out - ref)))}"

    # Case 2: larger batch with padded rows -> fused path, multi-tile internal loop.
    batch2 = 200
    feats2 = jnp.stack(
        [jax.random.randint(k2, (batch2,), 0, bb1_vocab_dim, jnp.int32),
         jax.random.randint(k3, (batch2,), 0, reaction_vocab_dim, jnp.int32)],
        axis=1)
    out2 = jax.block_until_ready(
        category_encoder_forward(feats2, params, tile_n=64))
    ref2 = _reference_forward(feats2, params)
    assert out2.shape == (batch2, enc_hidden_dim), out2.shape
    assert jnp.allclose(out2, ref2, atol=1e-3, rtol=1e-3), \
        f"max err {float(jnp.max(jnp.abs(out2 - ref2)))}"

    # Case 3: force the streaming (large-batch) fallback to exercise the grid,
    # the resident stats accumulators and the pipelined passes.
    out3 = jax.block_until_ready(
        category_encoder_forward(feats2, params, tile_n=64, force_streaming=True))
    assert out3.shape == (batch2, enc_hidden_dim), out3.shape
    assert jnp.allclose(out3, ref2, atol=1e-3, rtol=1e-3), \
        f"max err {float(jnp.max(jnp.abs(out3 - ref2)))}"

    print("KERNEL_OK")
</pallas_src>

<mosaic_0001>
module attributes {stable_mosaic.version = 11 : i64} {
  func.func @_fused_kernel(%arg0: i32, %arg1: memref<8x2xi32, #tpu.memory_space<vmem>>, %arg2: memref<128x128xf32, #tpu.memory_space<vmem>>, %arg3: memref<2x128xf32, #tpu.memory_space<vmem>>, %arg4: memref<128x128xf32, #tpu.memory_space<vmem>>, %arg5: memref<1x128xf32, #tpu.memory_space<vmem>>, %arg6: memref<2x128xf32, #tpu.memory_space<vmem>>, %arg7: memref<8x32xf32, #tpu.memory_space<vmem>>, %arg8: memref<8x128xf32, #tpu.memory_space<vmem>>, %arg9: memref<8x128xf32, #tpu.memory_space<vmem>>, %arg10: memref<8x256xf32, #tpu.memory_space<vmem>>, %arg11: memref<8x256xf32, #tpu.memory_space<vmem>>) attributes {dimension_semantics = [#tpu.dimension_semantics<arbitrary>], iteration_bounds = array<i64: 1>, scalar_prefetch = 0 : i64, scratch_operands = 4 : i64, tpu.core_type = #tpu.core_type<tc>, window_params = [{pipeline_mode = #tpu.pipeline_mode<synchronous>, transform_indices = @transform_0, window_bounds = array<i64: 8, 2>}, {pipeline_mode = #tpu.pipeline_mode<synchronous>, transform_indices = @transform_1, window_bounds = array<i64: 128, 128>}, {pipeline_mode = #tpu.pipeline_mode<synchronous>, transform_indices = @transform_2, window_bounds = array<i64: 2, 128>}, {pipeline_mode = #tpu.pipeline_mode<synchronous>, transform_indices = @transform_3, window_bounds = array<i64: 128, 128>}, {pipeline_mode = #tpu.pipeline_mode<synchronous>, transform_indices = @transform_4, window_bounds = array<i64: 1, 128>}, {pipeline_mode = #tpu.pipeline_mode<synchronous>, transform_indices = @transform_5, window_bounds = array<i64: 2, 128>}, {pipeline_mode = #tpu.pipeline_mode<synchronous>, transform_indices = @transform_6, window_bounds = array<i64: 8, 32>}]} {
    %cst = arith.constant 0.000000e+00 : f32
    %0 = vector.broadcast %cst : f32 to vector<8x256xf32>
    %c0 = arith.constant 0 : index
    %c0_0 = arith.constant 0 : index
    %1 = vector.load %arg10[%c0, %c0_0] : memref<8x256xf32, #tpu.memory_space<vmem>>, vector<8x256xf32>
    tpu.vector_store %arg10[%c0, %c0_0], %0 {strides = array<i32>} : memref<8x256xf32, #tpu.memory_space<vmem>>, vector<8x256xf32>,
    %cst_1 = arith.constant 0.000000e+00 : f32
    %2 = vector.broadcast %cst_1 : f32 to vector<8x256xf32>
    %c0_2 = arith.constant 0 : index
    %c0_3 = arith.constant 0 : index
    %3 = vector.load %arg11[%c0_2, %c0_3] : memref<8x256xf32, #tpu.memory_space<vmem>>, vector<8x256xf32>
    tpu.vector_store %arg11[%c0_2, %c0_3], %2 {strides = array<i32>} : memref<8x256xf32, #tpu.memory_space<vmem>>, vector<8x256xf32>,
    %c0_i32 = arith.constant 0 : i32
    %c1_i32 = arith.constant 1 : i32
    %4 = arith.muli %c0_i32, %c1_i32 : i32
    %c0_i32_4 = arith.constant 0 : i32
    %5 = arith.addi %c0_i32_4, %4 : i32
    %c8_i32 = arith.constant 8 : i32
    %6 = arith.muli %5, %c8_i32 : i32
    %7 = tpu.assume_multiple %6, 8 : i32
    %8 = arith.index_cast %7 : i32 to index
    %c0_5 = arith.constant 0 : index
    %9 = vector.load %arg1[%8, %c0_5] : memref<8x2xi32, #tpu.memory_space<vmem>>, vector<8x2xi32>
    %10 = tpu.iota {dimensions = array<i32: 1>} : vector<8x128xi32>
    %11 = vector.extract_strided_slice %9 {offsets = [0, 0], sizes = [8, 1], strides = [1, 1]} : vector<8x2xi32> to vector<8x1xi32>
    %12 = vector.broadcast %11 : vector<8x1xi32> to vector<8x128xi32>
    %13 = arith.cmpi eq, %10, %12 : vector<8x128xi32>
    %14 = vector.extract_strided_slice %9 {offsets = [0, 1], sizes = [8, 1], strides = [1, 1]} : vector<8x2xi32> to vector<8x1xi32>
    %15 = vector.broadcast %14 : vector<8x1xi32> to vector<8x128xi32>
    %16 = arith.cmpi eq, %10, %15 : vector<8x128xi32>
    %17 = arith.ori %13, %16 : vector<8x128xi1>
    %18 = arith.extui %17 : vector<8x128xi1> to vector<8x128xi32>
    %19 = arith.sitofp %18 : vector<8x128xi32> to vector<8x128xf32>
    %c0_6 = arith.constant 0 : index
    %c0_7 = arith.constant 0 : index
    %20 = vector.load %arg2[%c0_6, %c0_7] : memref<128x128xf32, #tpu.memory_space<vmem>>, vector<128x128xf32>
    %cst_8 = arith.constant dense<0.000000e+00> : vector<8x128xf32>
    %21 = tpu.matmul %19, %20, %cst_8 {dimension_numbers = #tpu.dot_dimension_numbers<[1], [0], [0], [1], [0, 0, 1, 1], [], []>} : vector<8x128xf32>, vector<128x128xf32>, vector<8x128xf32> -> vector<8x128xf32>
    %cst_9 = arith.constant 0.000000e+00 : f32
    %22 = vector.broadcast %cst_9 : f32 to vector<8x128xf32>
    %23 = arith.cmpf ogt, %21, %22 : vector<8x128xf32>
    %cst_10 = arith.constant 0.00999999977 : f32
    %24 = vector.broadcast %cst_10 : f32 to vector<8x128xf32>
    %25 = arith.mulf %24, %21 : vector<8x128xf32>
    %26 = arith.select %23, %21, %25 : vector<8x128xi1>, vector<8x128xf32>
    %27 = arith.index_cast %7 : i32 to index
    %c0_11 = arith.constant 0 : index
    %28 = vector.load %arg8[%27, %c0_11] : memref<8x128xf32, #tpu.memory_space<vmem>>, vector<8x128xf32>
    tpu.vector_store %arg8[%27, %c0_11], %26 {strides = array<i32>} : memref<8x128xf32, #tpu.memory_space<vmem>>, vector<8x128xf32>,
    %c0_12 = arith.constant 0 : index
    %c0_13 = arith.constant 0 : index
    %29 = vector.load %arg10[%c0_12, %c0_13] : memref<8x256xf32, #tpu.memory_space<vmem>>, vector<8x256xf32>
    %c8_i32_14 = arith.constant 8 : i32
    %30 = arith.muli %5, %c8_i32_14 : i32
    %31 = tpu.iota {dimensions = array<i32: 1>} : vector<8x8xi32>
    %32 = vector.broadcast %30 : i32 to vector<8x8xi32>
    %33 = arith.addi %32, %31 : vector<8x8xi32>
    %34 = tpu.iota {dimensions = array<i32: 0>} : vector<8x8xi32>
    %c0_i32_15 = arith.constant 0 : i32
    %35 = vector.broadcast %c0_i32_15 : i32 to vector<8x8xi32>
    %36 = arith.cmpi eq, %34, %35 : vector<8x8xi32>
    %c8_i32_16 = arith.constant 8 : i32
    %37 = vector.broadcast %c8_i32_16 : i32 to vector<8x8xi32>
    %38 = arith.cmpi slt, %33, %37 : vector<8x8xi32>
    %39 = arith.andi %36, %38 : vector<8x8xi1>
    %cst_17 = arith.constant 1.000000e+00 : f32
    %cst_18 = arith.constant 0.000000e+00 : f32
    %40 = vector.broadcast %cst_17 : f32 to vector<8x8xf32>
    %41 = vector.broadcast %cst_18 : f32 to vector<8x8xf32>
    %42 = arith.select %39, %40, %41 : vector<8x8xi1>, vector<8x8xf32>
    %43 = arith.mulf %26, %26 : vector<8x128xf32>
    %44 = tpu.concatenate %26, %43 in 1 : vector<8x128xf32>, vector<8x128xf32> -> vector<8x256xf32>
    %cst_19 = arith.constant dense<0.000000e+00> : vector<8x256xf32>
    %45 = tpu.matmul %42, %44, %cst_19 {dimension_numbers = #tpu.dot_dimension_numbers<[1], [0], [0], [1], [0, 0, 1, 1], [], []>} : vector<8x8xf32>, vector<8x256xf32>, vector<8x256xf32> -> vector<8x256xf32>
    %46 = arith.addf %29, %45 : vector<8x256xf32>
    %c0_20 = arith.constant 0 : index
    %c0_21 = arith.constant 0 : index
    %47 = vector.load %arg10[%c0_20, %c0_21] : memref<8x256xf32, #tpu.memory_space<vmem>>, vector<8x256xf32>
    tpu.vector_store %arg10[%c0_20, %c0_21], %46 {strides = array<i32>} : memref<8x256xf32, #tpu.memory_space<vmem>>, vector<8x256xf32>,
    %c1_i32_22 = arith.constant 1 : i32
    %c0_23 = arith.constant 0 : index
    %c0_24 = arith.constant 0 : index
    %48 = vector.load %arg10[%c0_23, %c0_24] : memref<8x256xf32, #tpu.memory_space<vmem>>, vector<8x256xf32>
    %c0_25 = arith.constant 0 : index
    %c0_26 = arith.constant 0 : index
    %49 = vector.load %arg3[%c0_25, %c0_26] : memref<2x128xf32, #tpu.memory_space<vmem>>, vector<2x128xf32>
    %50 = vector.extract_strided_slice %48 {offsets = [0, 0], sizes = [1, 128], strides = [1, 1]} : vector<8x256xf32> to vector<1x128xf32>
    %cst_27 = arith.constant 1.250000e-01 : f32
    %51 = vector.broadcast %cst_27 : f32 to vector<1x128xf32>
    %52 = arith.mulf %50, %51 : vector<1x128xf32>
    %53 = vector.extract_strided_slice %48 {offsets = [0, 128], sizes = [1, 128], strides = [1, 1]} : vector<8x256xf32> to vector<1x128xf32>
    %cst_28 = arith.constant 1.250000e-01 : f32
    %54 = vector.broadcast %cst_28 : f32 to vector<1x128xf32>
    %55 = arith.mulf %53, %54 : vector<1x128xf32>
    %56 = arith.mulf %52, %52 : vector<1x128xf32>
    %57 = arith.subf %55, %56 : vector<1x128xf32>
    %cst_29 = arith.constant 0.000000e+00 : f32
    %58 = vector.broadcast %cst_29 : f32 to vector<1x128xf32>
    %59 = arith.maximumf %57, %58 : vector<1x128xf32>
    %cst_30 = arith.constant 9.99999974E-6 : f32
    %60 = vector.broadcast %cst_30 : f32 to vector<1x128xf32>
    %61 = arith.addf %59, %60 : vector<1x128xf32>
    %62 = math.rsqrt %61 : vector<1x128xf32>
    %63 = vector.extract_strided_slice %49 {offsets = [0, 0], sizes = [1, 128], strides = [1, 1]} : vector<2x128xf32> to vector<1x128xf32>
    %64 = arith.mulf %63, %62 : vector<1x128xf32>
    %65 = vector.extract_strided_slice %49 {offsets = [1, 0], sizes = [1, 128], strides = [1, 1]} : vector<2x128xf32> to vector<1x128xf32>
    %66 = arith.mulf %52, %64 : vector<1x128xf32>
    %67 = arith.subf %65, %66 : vector<1x128xf32>
    %c0_i32_31 = arith.constant 0 : i32
    %c1_i32_32 = arith.constant 1 : i32
    %68 = arith.muli %c0_i32_31, %c1_i32_32 : i32
    %c0_i32_33 = arith.constant 0 : i32
    %69 = arith.addi %c0_i32_33, %68 : i32
    %c8_i32_34 = arith.constant 8 : i32
    %70 = arith.muli %69, %c8_i32_34 : i32
    %71 = tpu.assume_multiple %70, 8 : i32
    %72 = arith.index_cast %71 : i32 to index
    %c0_35 = arith.constant 0 : index
    %73 = vector.load %arg8[%72, %c0_35] : memref<8x128xf32, #tpu.memory_space<vmem>>, vector<8x128xf32>
    %74 = vector.broadcast %64 : vector<1x128xf32> to vector<8x128xf32>
    %75 = arith.mulf %73, %74 : vector<8x128xf32>
    %76 = vector.broadcast %67 : vector<1x128xf32> to vector<8x128xf32>
    %77 = arith.addf %75, %76 : vector<8x128xf32>
    %c0_36 = arith.constant 0 : index
    %c0_37 = arith.constant 0 : index
    %78 = vector.load %arg4[%c0_36, %c0_37] : memref<128x128xf32, #tpu.memory_space<vmem>>, vector<128x128xf32>
    %cst_38 = arith.constant dense<0.000000e+00> : vector<8x128xf32>
    %79 = tpu.matmul %77, %78, %cst_38 {dimension_numbers = #tpu.dot_dimension_numbers<[1], [0], [0], [1], [0, 0, 1, 1], [], []>} : vector<8x128xf32>, vector<128x128xf32>, vector<8x128xf32> -> vector<8x128xf32>
    %c0_39 = arith.constant 0 : index
    %c0_40 = arith.constant 0 : index
    %80 = vector.load %arg5[%c0_39, %c0_40] : memref<1x128xf32, #tpu.memory_space<vmem>>, vector<1x128xf32>
    %81 = vector.broadcast %80 : vector<1x128xf32> to vector<8x128xf32>
    %82 = arith.addf %79, %81 : vector<8x128xf32>
    %cst_41 = arith.constant 0.000000e+00 : f32
    %83 = vector.broadcast %cst_41 : f32 to vector<8x128xf32>
    %84 = arith.cmpf ogt, %82, %83 : vector<8x128xf32>
    %cst_42 = arith.constant 0.00999999977 : f32
    %85 = vector.broadcast %cst_42 : f32 to vector<8x128xf32>
    %86 = arith.mulf %85, %82 : vector<8x128xf32>
    %87 = arith.select %84, %82, %86 : vector<8x128xi1>, vector<8x128xf32>
    %88 = arith.index_cast %71 : i32 to index
    %c0_43 = arith.constant 0 : index
    %89 = vector.load %arg9[%88, %c0_43] : memref<8x128xf32, #tpu.memory_space<vmem>>, vector<8x128xf32>
    tpu.vector_store %arg9[%88, %c0_43], %87 {strides = array<i32>} : memref<8x128xf32, #tpu.memory_space<vmem>>, vector<8x128xf32>,
    %c0_44 = arith.constant 0 : index
    %c0_45 = arith.constant 0 : index
    %90 = vector.load %arg11[%c0_44, %c0_45] : memref<8x256xf32, #tpu.memory_space<vmem>>, vector<8x256xf32>
    %c8_i32_46 = arith.constant 8 : i32
    %91 = arith.muli %69, %c8_i32_46 : i32
    %92 = tpu.iota {dimensions = array<i32: 1>} : vector<8x8xi32>
    %93 = vector.broadcast %91 : i32 to vector<8x8xi32>
    %94 = arith.addi %93, %92 : vector<8x8xi32>
    %95 = tpu.iota {dimensions = array<i32: 0>} : vector<8x8xi32>
    %c0_i32_47 = arith.constant 0 : i32
    %96 = vector.broadcast %c0_i32_47 : i32 to vector<8x8xi32>
    %97 = arith.cmpi eq, %95, %96 : vector<8x8xi32>
    %c8_i32_48 = arith.constant 8 : i32
    %98 = vector.broadcast %c8_i32_48 : i32 to vector<8x8xi32>
    %99 = arith.cmpi slt, %94, %98 : vector<8x8xi32>
    %100 = arith.andi %97, %99 : vector<8x8xi1>
    %cst_49 = arith.constant 1.000000e+00 : f32
    %cst_50 = arith.constant 0.000000e+00 : f32
    %101 = vector.broadcast %cst_49 : f32 to vector<8x8xf32>
    %102 = vector.broadcast %cst_50 : f32 to vector<8x8xf32>
    %103 = arith.select %100, %101, %102 : vector<8x8xi1>, vector<8x8xf32>
    %104 = arith.mulf %87, %87 : vector<8x128xf32>
    %105 = tpu.concatenate %87, %104 in 1 : vector<8x128xf32>, vector<8x128xf32> -> vector<8x256xf32>
    %cst_51 = arith.constant dense<0.000000e+00> : vector<8x256xf32>
    %106 = tpu.matmul %103, %105, %cst_51 {dimension_numbers = #tpu.dot_dimension_numbers<[1], [0], [0], [1], [0, 0, 1, 1], [], []>} : vector<8x8xf32>, vector<8x256xf32>, vector<8x256xf32> -> vector<8x256xf32>
    %107 = arith.addf %90, %106 : vector<8x256xf32>
    %c0_52 = arith.constant 0 : index
    %c0_53 = arith.constant 0 : index
    %108 = vector.load %arg11[%c0_52, %c0_53] : memref<8x256xf32, #tpu.memory_space<vmem>>, vector<8x256xf32>
    tpu.vector_store %arg11[%c0_52, %c0_53], %107 {strides = array<i32>} : memref<8x256xf32, #tpu.memory_space<vmem>>, vector<8x256xf32>,
    %c1_i32_54 = arith.constant 1 : i32
    %c0_55 = arith.constant 0 : index
    %c0_56 = arith.constant 0 : index
    %109 = vector.load %arg11[%c0_55, %c0_56] : memref<8x256xf32, #tpu.memory_space<vmem>>, vector<8x256xf32>
    %c0_57 = arith.constant 0 : index
    %c0_58 = arith.constant 0 : index
    %110 = vector.load %arg6[%c0_57, %c0_58] : memref<2x128xf32, #tpu.memory_space<vmem>>, vector<2x128xf32>
    %111 = vector.extract_strided_slice %109 {offsets = [0, 0], sizes = [1, 128], strides = [1, 1]} : vector<8x256xf32> to vector<1x128xf32>
    %cst_59 = arith.constant 1.250000e-01 : f32
    %112 = vector.broadcast %cst_59 : f32 to vector<1x128xf32>
    %113 = arith.mulf %111, %112 : vector<1x128xf32>
    %114 = vector.extract_strided_slice %109 {offsets = [0, 128], sizes = [1, 128], strides = [1, 1]} : vector<8x256xf32> to vector<1x128xf32>
    %cst_60 = arith.constant 1.250000e-01 : f32
    %115 = vector.broadcast %cst_60 : f32 to vector<1x128xf32>
    %116 = arith.mulf %114, %115 : vector<1x128xf32>
    %117 = arith.mulf %113, %113 : vector<1x128xf32>
    %118 = arith.subf %116, %117 : vector<1x128xf32>
    %cst_61 = arith.constant 0.000000e+00 : f32
    %119 = vector.broadcast %cst_61 : f32 to vector<1x128xf32>
    %120 = arith.maximumf %118, %119 : vector<1x128xf32>
    %cst_62 = arith.constant 9.99999974E-6 : f32
    %121 = vector.broadcast %cst_62 : f32 to vector<1x128xf32>
    %122 = arith.addf %120, %121 : vector<1x128xf32>
    %123 = math.rsqrt %122 : vector<1x128xf32>
    %124 = vector.extract_strided_slice %110 {offsets = [0, 0], sizes = [1, 128], strides = [1, 1]} : vector<2x128xf32> to vector<1x128xf32>
    %125 = arith.mulf %124, %123 : vector<1x128xf32>
    %126 = vector.extract_strided_slice %110 {offsets = [1, 0], sizes = [1, 128], strides = [1, 1]} : vector<2x128xf32> to vector<1x128xf32>
    %127 = arith.mulf %113, %125 : vector<1x128xf32>
    %128 = arith.subf %126, %127 : vector<1x128xf32>
    %c0_i32_63 = arith.constant 0 : i32
    %c1_i32_64 = arith.constant 1 : i32
    %129 = arith.muli %c0_i32_63, %c1_i32_64 : i32
    %c0_i32_65 = arith.constant 0 : i32
    %130 = arith.addi %c0_i32_65, %129 : i32
    %c8_i32_66 = arith.constant 8 : i32
    %131 = arith.muli %130, %c8_i32_66 : i32
    %132 = tpu.assume_multiple %131, 8 : i32
    %133 = arith.index_cast %132 : i32 to index
    %c0_67 = arith.constant 0 : index
    %134 = vector.load %arg9[%133, %c0_67] : memref<8x128xf32, #tpu.memory_space<vmem>>, vector<8x128xf32>
    %135 = vector.broadcast %125 : vector<1x128xf32> to vector<8x128xf32>
    %136 = arith.mulf %134, %135 : vector<8x128xf32>
    %137 = vector.broadcast %128 : vector<1x128xf32> to vector<8x128xf32>
    %138 = arith.addf %136, %137 : vector<8x128xf32>
    %139 = vector.extract_strided_slice %138 {offsets = [0, 0], sizes = [8, 32], strides = [1, 1]} : vector<8x128xf32> to vector<8x32xf32>
    %140 = arith.index_cast %132 : i32 to index
    %c0_68 = arith.constant 0 : index
    %141 = vector.load %arg7[%140, %c0_68] : memref<8x32xf32, #tpu.memory_space<vmem>>, vector<8x32xf32>
    tpu.vector_store %arg7[%140, %c0_68], %139 {strides = array<i32>} : memref<8x32xf32, #tpu.memory_space<vmem>>, vector<8x32xf32>,
    %c1_i32_69 = arith.constant 1 : i32
    return
  }
  func.func @transform_0(%arg0: i32) -> (i32, i32) {
    %c0_i32 = arith.constant 0 : i32
    %c0_i32_0 = arith.constant 0 : i32
    %c0_i32_1 = arith.constant 0 : i32
    return %c0_i32, %c0_i32_0 : i32, i32
  }
  func.func @transform_1(%arg0: i32) -> (i32, i32) {
    %c0_i32 = arith.constant 0 : i32
    %c0_i32_0 = arith.constant 0 : i32
    %c0_i32_1 = arith.constant 0 : i32
    return %c0_i32, %c0_i32_0 : i32, i32
  }
  func.func @transform_2(%arg0: i32) -> (i32, i32) {
    %c0_i32 = arith.constant 0 : i32
    %c0_i32_0 = arith.constant 0 : i32
    %c0_i32_1 = arith.constant 0 : i32
    return %c0_i32, %c0_i32_0 : i32, i32
  }
  func.func @transform_3(%arg0: i32) -> (i32, i32) {
    %c0_i32 = arith.constant 0 : i32
    %c0_i32_0 = arith.constant 0 : i32
    %c0_i32_1 = arith.constant 0 : i32
    return %c0_i32, %c0_i32_0 : i32, i32
  }
  func.func @transform_4(%arg0: i32) -> (i32, i32) {
    %c0_i32 = arith.constant 0 : i32
    %c0_i32_0 = arith.constant 0 : i32
    %c0_i32_1 = arith.constant 0 : i32
    return %c0_i32, %c0_i32_0 : i32, i32
  }
  func.func @transform_5(%arg0: i32) -> (i32, i32) {
    %c0_i32 = arith.constant 0 : i32
    %c0_i32_0 = arith.constant 0 : i32
    %c0_i32_1 = arith.constant 0 : i32
    return %c0_i32, %c0_i32_0 : i32, i32
  }
  func.func @transform_6(%arg0: i32) -> (i32, i32) {
    %c0_i32 = arith.constant 0 : i32
    %c0_i32_0 = arith.constant 0 : i32
    %c0_i32_1 = arith.constant 0 : i32
    return %c0_i32, %c0_i32_0 : i32, i32
  }
}

</mosaic_0001>

<llo_original>
// kernel: category_encoder_forward.1
$region0: #{category_encoder_forward.1}
  #allocation0 [shape = 'u32[]', space=smem, size = 0x4, offset = 0x4, fixed_abs, tag = 'smem constant byte address 0x4 - core index']
  #allocation1 [shape = 'u32[144,128]{1,0:T(1,128)}', space=vmem, size = 0x12000, scoped, tag = 'internal scratch']
  #allocation2 [shape = 'f32[8,128]{1,0:T(8,128)}', space=vmem, size = 0x1000, scoped, tag = 'scratch operand']
  #allocation3 [shape = 'f32[8,128]{1,0:T(8,128)}', space=vmem, size = 0x1000, scoped, tag = 'scratch operand']
  #allocation4 [shape = 'f32[8,256]{1,0:T(8,128)}', space=vmem, size = 0x2000, scoped, tag = 'scratch operand']
  #allocation5 [shape = 'f32[8,256]{1,0:T(8,128)}', space=vmem, size = 0x2000, scoped, tag = 'scratch operand']
  %s0 = inlined_call_operand.vmem [shape: s32[8,2], index: 0, kind: input, shape index: {}]
  %s1 = inlined_call_operand.vmem [shape: f32[128,128], index: 1, kind: input, shape index: {}]
  %s2 = inlined_call_operand.vmem [shape: f32[2,128], index: 2, kind: input, shape index: {}]
  %s3 = inlined_call_operand.vmem [shape: f32[128,128], index: 3, kind: input, shape index: {}]
  %s4 = inlined_call_operand.vmem [shape: f32[1,128], index: 4, kind: input, shape index: {}]
  %s5 = inlined_call_operand.vmem [shape: f32[2,128], index: 5, kind: input, shape index: {}]
  %s6 = inlined_call_operand.hbm [shape: f32[8,32], index: 6, kind: output, shape index: {}]
  %s7 = sld [smem:[#allocation0]]
  $region34: #{category_encoder_forward.1} parent=0
    _
  %s9 = ssub.s32 1, %s7
  %s10 = scalar_select 0, %s9, %s7
  $region1: #{category_encoder_forward.1} parent=0
    #allocation6 [shape = 'u8[4096]{0}', space=vmem, size = 0x1000, scoped, tag = 'output window, operand 0, single buffered']
    #allocation7 [shape = 's32[1]{0}', space=sflag, size = 0x4, scoped, tag = 'scoped memory for category_encoder_forward.1']
    %11 = vsyncpa [#allocation7], 0
    // Predicated region
    $region2: #{category_encoder_forward.1} parent=1 // pred_check
      _
    $region3: #{category_encoder_forward.1} parent=1 // pred_check_branch
      %13 = sbr.rel (0) target = $region5
    $region4: #{category_encoder_forward.1} parent=1 // pred_region
      _
    $region5: #{category_encoder_forward.1} parent=1 // pred_fallthru
      _
    // Predicated region
    $region6: #{category_encoder_forward.1} parent=1 // pred_check
      _
    $region7: #{category_encoder_forward.1} parent=1 // pred_check_branch
      %15 = sbr.rel (0) target = $region9
    $region8: #{category_encoder_forward.1} parent=1 // pred_region
      _
    $region9: #{category_encoder_forward.1} parent=1 // pred_fallthru
      _
    // Predicated region
    $region10: #{category_encoder_forward.1} parent=1 // pred_check
      _
    $region11: #{category_encoder_forward.1} parent=1 // pred_check_branch
      %17 = sbr.rel (0) target = $region13
    $region12: #{category_encoder_forward.1} parent=1 // pred_region
      _
    $region13: #{category_encoder_forward.1} parent=1 // pred_fallthru
      _
    // Predicated region
    $region14: #{category_encoder_forward.1} parent=1 // pred_check
      _
    $region15: #{category_encoder_forward.1} parent=1 // pred_check_branch
      %19 = sbr.rel (0) target = $region17
    $region16: #{category_encoder_forward.1} parent=1 // pred_region
      _
    $region17: #{category_encoder_forward.1} parent=1 // pred_fallthru
      _
    // Predicated region
    $region18: #{category_encoder_forward.1} parent=1 // pred_check
      _
    $region19: #{category_encoder_forward.1} parent=1 // pred_check_branch
      %21 = sbr.rel (0) target = $region21
    $region20: #{category_encoder_forward.1} parent=1 // pred_region
      _
    $region21: #{category_encoder_forward.1} parent=1 // pred_fallthru
      _
    // Predicated region
    $region22: #{category_encoder_forward.1} parent=1 // pred_check
      _
    $region23: #{category_encoder_forward.1} parent=1 // pred_check_branch
      %23 = sbr.rel (0) target = $region25
    $region24: #{category_encoder_forward.1} parent=1 // pred_region
      _
    $region25: #{category_encoder_forward.1} parent=1 // pred_fallthru
      _
    %24 = vst [vmem:[#allocation4] sm:$0xff] 0.0
    %25 = vst [vmem:[#allocation4 + $0x8] sm:$0xff] 0.0
    %26 = vst [vmem:[#allocation5] sm:$0xff] 0.0
    %27 = vst [vmem:[#allocation5 + $0x8] sm:$0xff] 0.0
    %v28 = vld [vmem:[%s0] sm:$0xff]
    %v29 = vlaneseq
    %v30 = vand.u32 %v29, 127
    %31 = vset.pattern.permute.xlu0 0
    %32 = vperm.xlu0 %31, %v28
    %v33 = vpop.permute.xlu0 %32
    %vm34 = vcmp.eq.s32.totalorder %v30, %v33
    %35 = vset.pattern.permute.xlu0 1
    %36 = vperm.xlu0 %35, %v28
    %v37 = vpop.permute.xlu0 %36
    %vm38 = vcmp.eq.s32.totalorder %v30, %v37
    %vm39 = vmor %vm34, %vm38
    %v40 = vsel %vm39, 1, 0
    %v41 = vcvt.s32.f32 %v40
    %v42 = vld [vmem:[%s1] sm:$0xff]
    %v43 = vld [vmem:[%s1 + $0x8] sm:$0xff]
    %v44 = vld [vmem:[%s1 + $0x10] sm:$0xff]
    %v45 = vld [vmem:[%s1 + $0x18] sm:$0xff]
    %v46 = vld [vmem:[%s1 + $0x20] sm:$0xff]
    %v47 = vld [vmem:[%s1 + $0x28] sm:$0xff]
    %v48 = vld [vmem:[%s1 + $0x30] sm:$0xff]
    %v49 = vld [vmem:[%s1 + $0x38] sm:$0xff]
    %v50 = vld [vmem:[%s1 + $0x40] sm:$0xff]
    %v51 = vld [vmem:[%s1 + $0x48] sm:$0xff]
    %v52 = vld [vmem:[%s1 + $0x50] sm:$0xff]
    %v53 = vld [vmem:[%s1 + $0x58] sm:$0xff]
    %v54 = vld [vmem:[%s1 + $0x60] sm:$0xff]
    %v55 = vld [vmem:[%s1 + $0x68] sm:$0xff]
    %v56 = vld [vmem:[%s1 + $0x70] sm:$0xff]
    %v57 = vld [vmem:[%s1 + $0x78] sm:$0xff]
    %58 = vmatprep.subr.mxu0 0.0
    %59 = vmatpush1.msra.mxu0 %v42
    %60 = vmatprep.subr.mxu0 0.0
    %61 = vmatpush1.msra.mxu0 %v43
    %62 = vmatprep.subr.mxu0 0.0
    %63 = vmatpush1.msra.mxu0 %v44
    %64 = vmatprep.subr.mxu0 0.0
    %65 = vmatpush1.msra.mxu0 %v45
    %66 = vmatprep.subr.mxu0 0.0
    %67 = vmatpush1.msra.mxu0 %v46
    %68 = vmatprep.subr.mxu0 0.0
    %69 = vmatpush1.msra.mxu0 %v47
    %70 = vmatprep.subr.mxu0 0.0
    %71 = vmatpush1.msra.mxu0 %v48
    %72 = vmatprep.subr.mxu0 0.0
    %73 = vmatpush1.msra.mxu0 %v49
    %74 = vmatprep.subr.mxu0 0.0
    %75 = vmatpush1.msra.mxu0 %v50
    %76 = vmatprep.subr.mxu0 0.0
    %77 = vmatpush1.msra.mxu0 %v51
    %78 = vmatprep.subr.mxu0 0.0
    %79 = vmatpush1.msra.mxu0 %v52
    %80 = vmatprep.subr.mxu0 0.0
    %81 = vmatpush1.msra.mxu0 %v53
    %82 = vmatprep.subr.mxu0 0.0
    %83 = vmatpush1.msra.mxu0 %v54
    %84 = vmatprep.subr.mxu0 0.0
    %85 = vmatpush1.msra.mxu0 %v55
    %86 = vmatprep.subr.mxu0 0.0
    %87 = vmatpush1.msra.mxu0 %v56
    %88 = vmatprep.subr.mxu0 0.0
    %89 = vmatpush1.msra.mxu0 %v57
    %90 = vmatprep.subr.mxu0 0.0
    %91 = vmatpush1.msra.mxu0 0.0
    %92 = vmatprep.subr.mxu0 0.0
    %93 = vmatpush1.msra.mxu0 0.0
    %94 = vmatprep.subr.mxu0 0.0
    %95 = vmatpush1.msra.mxu0 0.0
    %96 = vmatprep.subr.mxu0 0.0
    %97 = vmatpush1.msra.mxu0 0.0
    %98 = vmatprep.subr.mxu0 0.0
    %99 = vmatpush1.msra.mxu0 0.0
    %100 = vmatprep.subr.mxu0 0.0
    %101 = vmatpush1.msra.mxu0 0.0
    %102 = vmatprep.subr.mxu0 0.0
    %103 = vmatpush1.msra.mxu0 0.0
    %104 = vmatprep.subr.mxu0 0.0
    %105 = vmatpush1.msra.mxu0 0.0
    %106 = vmatprep.subr.mxu0 0.0
    %107 = vmatpush1.msra.mxu0 0.0
    %108 = vmatprep.subr.mxu0 0.0
    %109 = vmatpush1.msra.mxu0 0.0
    %110 = vmatprep.subr.mxu0 0.0
    %111 = vmatpush1.msra.mxu0 0.0
    %112 = vmatprep.subr.mxu0 0.0
    %113 = vmatpush1.msra.mxu0 0.0
    %114 = vmatprep.subr.mxu0 0.0
    %115 = vmatpush1.msra.mxu0 0.0
    %116 = vmatprep.subr.mxu0 0.0
    %117 = vmatpush1.msra.mxu0 0.0
    %118 = vmatprep.subr.mxu0 0.0
    %119 = vmatpush1.msra.mxu0 0.0
    %120 = vmatprep.subr.mxu0 0.0
    %121 = vmatpush1.msra.mxu0 0.0
    %122 = vmatprep.mubr.f32.mxu0 0.0
    %123 = vmatmul.mubr.f32.gmra.mrb[0].mxu0 %v41
    %v124 = vpop.f32.mrb[0].mxu0
    %v125 = vadd.f32 0.0, %v124
    %v126 = vpop.f32.mrb[0].mxu0
    %127 = vdwg.mxu0
    %vm128 = vcmp.gt.f32.partialorder %v125, 0.0
    %v129 = vmul.f32 %v125, 0.01
    %v130 = vsel %vm128, %v125, %v129
    %131 = vst [vmem:[#allocation2] sm:$0xff] %v130
    %v132 = vld [vmem:[#allocation4] sm:$0xff]
    %v133 = vld [vmem:[#allocation4 + $0x8] sm:$0xff]
    %v134 = vlaneseq
    %v135 = vshrl.u32 %v134, 7
    %vm136 = vcmp.eq.s32.totalorder %v135, 0
    %vm137 = vcmp.lt.s32.totalorder %v30, 8
    %vm138 = vmand %vm136, %vm137
    %v139 = vsel %vm138, 1.0, 0.0
    %v140 = vmul.f32 %v130, %v130
    %vm141 = vcmask 64512
    %v143 = vsel %vm141, %v139, 0
    %145 = vmatprep.subr.mxu0 %v140
    %146 = vmatpush1.msra.mxu0 %v130
    %147 = vmatprep.subr.mxu0 0.0
    %148 = vmatpush1.msra.mxu0 0.0
    %149 = vmatprep.subr.mxu0 0.0
    %150 = vmatpush1.msra.mxu0 0.0
    %151 = vmatprep.subr.mxu0 0.0
    %152 = vmatpush1.msra.mxu0 0.0
    %153 = vmatprep.subr.mxu0 0.0
    %154 = vmatpush1.msra.mxu0 0.0
    %155 = vmatprep.subr.mxu0 0.0
    %156 = vmatpush1.msra.mxu0 0.0
    %157 = vmatprep.subr.mxu0 0.0
    %158 = vmatpush1.msra.mxu0 0.0
    %159 = vmatprep.subr.mxu0 0.0
    %160 = vmatpush1.msra.mxu0 0.0
    %161 = vmatprep.subr.mxu0 0.0
    %162 = vmatpush1.msra.mxu0 0.0
    %163 = vmatprep.subr.mxu0 0.0
    %164 = vmatpush1.msra.mxu0 0.0
    %165 = vmatprep.subr.mxu0 0.0
    %166 = vmatpush1.msra.mxu0 0.0
    %167 = vmatprep.subr.mxu0 0.0
    %168 = vmatpush1.msra.mxu0 0.0
    %169 = vmatprep.subr.mxu0 0.0
    %170 = vmatpush1.msra.mxu0 0.0
    %171 = vmatprep.subr.mxu0 0.0
    %172 = vmatpush1.msra.mxu0 0.0
    %173 = vmatprep.subr.mxu0 0.0
    %174 = vmatpush1.msra.mxu0 0.0
    %175 = vmatprep.subr.mxu0 0.0
    %176 = vmatpush1.msra.mxu0 0.0
    %177 = vmatprep.subr.mxu0 0.0
    %178 = vmatpush1.msra.mxu0 0.0
    %179 = vmatprep.subr.mxu0 0.0
    %180 = vmatpush1.msra.mxu0 0.0
    %181 = vmatprep.subr.mxu0 0.0
    %182 = vmatpush1.msra.mxu0 0.0
    %183 = vmatprep.subr.mxu0 0.0
    %184 = vmatpush1.msra.mxu0 0.0
    %185 = vmatprep.subr.mxu0 0.0
    %186 = vmatpush1.msra.mxu0 0.0
    %187 = vmatprep.subr.mxu0 0.0
    %188 = vmatpush1.msra.mxu0 0.0
    %189 = vmatprep.subr.mxu0 0.0
    %190 = vmatpush1.msra.mxu0 0.0
    %191 = vmatprep.subr.mxu0 0.0
    %192 = vmatpush1.msra.mxu0 0.0
    %193 = vmatprep.subr.mxu0 0.0
    %194 = vmatpush1.msra.mxu0 0.0
    %195 = vmatprep.subr.mxu0 0.0
    %196 = vmatpush1.msra.mxu0 0.0
    %197 = vmatprep.subr.mxu0 0.0
    %198 = vmatpush1.msra.mxu0 0.0
    %199 = vmatprep.subr.mxu0 0.0
    %200 = vmatpush1.msra.mxu0 0.0
    %201 = vmatprep.subr.mxu0 0.0
    %202 = vmatpush1.msra.mxu0 0.0
    %203 = vmatprep.subr.mxu0 0.0
    %204 = vmatpush1.msra.mxu0 0.0
    %205 = vmatprep.subr.mxu0 0.0
    %206 = vmatpush1.msra.mxu0 0.0
    %207 = vmatprep.subr.mxu0 0.0
    %208 = vmatpush1.msra.mxu0 0.0
    %209 = vmatprep.mubr.f32.mxu0 0.0
    %210 = vmatmul.mubr.f32.gmra.mrb[0].mxu0 %v143
    %v211 = vpop.f32.mrb[0].mxu0
    %v212 = vadd.f32 0.0, %v211
    %v213 = vpop.f32.mrb[0].mxu0
    %v214 = vadd.f32 0.0, %v213
    %215 = vdwg.mxu0
    %v216 = vadd.f32 %v132, %v212
    %v217 = vadd.f32 %v133, %v214
    %218 = vst [vmem:[#allocation4] sm:$0xff] %v216
    %219 = vst [vmem:[#allocation4 + $0x8] sm:$0xff] %v217
    %v220 = vld [vmem:[#allocation4] sm:$0xff]
    %v221 = vld [vmem:[#allocation4 + $0x8] sm:$0xff]
    %v222 = vld [vmem:[%s2] sm:$0x3]
    %v223 = vmul.f32 %v220, 0.125
    %v224 = vmul.f32 %v221, 0.125
    %v225 = vmul.f32 %v223, %v223
    %v226 = vsub.f32 %v224, %v225
    %v227 = vmax.f32 %v226, 0.0
    %v228 = vadd.f32 %v227, 1e-05
    %v229 = vrsqrt.pop %v228
    %v230 = vmul.f32 %v222, %v229
    %v231 = vmul.f32 %v223, %v230
    %v233 = vrot.slane %v231, 7
    %v235 = vsub.f32 %v222, %v233
    %v236 = vld [vmem:[#allocation2] sm:$0xff]
    %v237 = vlaneseq
    %v238 = vshrl.u32 %v237, 7
    %v239 = vsub.s32 0, %v238
    %v240 = vrot.slane %v230, %v239
    %v241 = vmul.f32 %v236, %v240
    %v242 = vlaneseq
    %v243 = vshrl.u32 %v242, 7
    %v244 = vsub.s32 1, %v243
    %v245 = vrot.slane %v235, %v244
    %v246 = vadd.f32 %v241, %v245
    %v247 = vld [vmem:[%s3] sm:$0xff]
    %v248 = vld [vmem:[%s3 + $0x8] sm:$0xff]
    %v249 = vld [vmem:[%s3 + $0x10] sm:$0xff]
    %v250 = vld [vmem:[%s3 + $0x18] sm:$0xff]
    %v251 = vld [vmem:[%s3 + $0x20] sm:$0xff]
    %v252 = vld [vmem:[%s3 + $0x28] sm:$0xff]
    %v253 = vld [vmem:[%s3 + $0x30] sm:$0xff]
    %v254 = vld [vmem:[%s3 + $0x38] sm:$0xff]
    %v255 = vld [vmem:[%s3 + $0x40] sm:$0xff]
    %v256 = vld [vmem:[%s3 + $0x48] sm:$0xff]
    %v257 = vld [vmem:[%s3 + $0x50] sm:$0xff]
    %v258 = vld [vmem:[%s3 + $0x58] sm:$0xff]
    %v259 = vld [vmem:[%s3 + $0x60] sm:$0xff]
    %v260 = vld [vmem:[%s3 + $0x68] sm:$0xff]
    %v261 = vld [vmem:[%s3 + $0x70] sm:$0xff]
    %v262 = vld [vmem:[%s3 + $0x78] sm:$0xff]
    %v263 = vld [vmem:[%s4] sm:$0x1]
    %v265 = vlaneseq
    %v266 = vshrl.u32 %v265, 7
    %v267 = vsub.s32 0, %v266
    %v268 = vrot.slane %v263, %v267
    %270 = vmatprep.subr.mxu0 0.0
    %271 = vmatpush1.msra.mxu0 %v247
    %272 = vmatprep.subr.mxu0 0.0
    %273 = vmatpush1.msra.mxu0 %v248
    %274 = vmatprep.subr.mxu0 0.0
    %275 = vmatpush1.msra.mxu0 %v249
    %276 = vmatprep.subr.mxu0 0.0
    %277 = vmatpush1.msra.mxu0 %v250
    %278 = vmatprep.subr.mxu0 0.0
    %279 = vmatpush1.msra.mxu0 %v251
    %280 = vmatprep.subr.mxu0 0.0
    %281 = vmatpush1.msra.mxu0 %v252
    %282 = vmatprep.subr.mxu0 0.0
    %283 = vmatpush1.msra.mxu0 %v253
    %284 = vmatprep.subr.mxu0 0.0
    %285 = vmatpush1.msra.mxu0 %v254
    %286 = vmatprep.subr.mxu0 0.0
    %287 = vmatpush1.msra.mxu0 %v255
    %288 = vmatprep.subr.mxu0 0.0
    %289 = vmatpush1.msra.mxu0 %v256
    %290 = vmatprep.subr.mxu0 0.0
    %291 = vmatpush1.msra.mxu0 %v257
    %292 = vmatprep.subr.mxu0 0.0
    %293 = vmatpush1.msra.mxu0 %v258
    %294 = vmatprep.subr.mxu0 0.0
    %295 = vmatpush1.msra.mxu0 %v259
    %296 = vmatprep.subr.mxu0 0.0
    %297 = vmatpush1.msra.mxu0 %v260
    %298 = vmatprep.subr.mxu0 0.0
    %299 = vmatpush1.msra.mxu0 %v261
    %300 = vmatprep.subr.mxu0 0.0
    %301 = vmatpush1.msra.mxu0 %v262
    %302 = vmatprep.subr.mxu0 0.0
    %303 = vmatpush1.msra.mxu0 0.0
    %304 = vmatprep.subr.mxu0 0.0
    %305 = vmatpush1.msra.mxu0 0.0
    %306 = vmatprep.subr.mxu0 0.0
    %307 = vmatpush1.msra.mxu0 0.0
    %308 = vmatprep.subr.mxu0 0.0
    %309 = vmatpush1.msra.mxu0 0.0
    %310 = vmatprep.subr.mxu0 0.0
    %311 = vmatpush1.msra.mxu0 0.0
    %312 = vmatprep.subr.mxu0 0.0
    %313 = vmatpush1.msra.mxu0 0.0
    %314 = vmatprep.subr.mxu0 0.0
    %315 = vmatpush1.msra.mxu0 0.0
    %316 = vmatprep.subr.mxu0 0.0
    %317 = vmatpush1.msra.mxu0 0.0
    %318 = vmatprep.subr.mxu0 0.0
    %319 = vmatpush1.msra.mxu0 0.0
    %320 = vmatprep.subr.mxu0 0.0
    %321 = vmatpush1.msra.mxu0 0.0
    %322 = vmatprep.subr.mxu0 0.0
    %323 = vmatpush1.msra.mxu0 0.0
    %324 = vmatprep.subr.mxu0 0.0
    %325 = vmatpush1.msra.mxu0 0.0
    %326 = vmatprep.subr.mxu0 0.0
    %327 = vmatpush1.msra.mxu0 0.0
    %328 = vmatprep.subr.mxu0 0.0
    %329 = vmatpush1.msra.mxu0 0.0
    %330 = vmatprep.subr.mxu0 0.0
    %331 = vmatpush1.msra.mxu0 0.0
    %332 = vmatprep.subr.mxu0 0.0
    %333 = vmatpush1.msra.mxu0 0.0
    %334 = vmatprep.mubr.f32.mxu0 0.0
    %335 = vmatmul.mubr.f32.gmra.mrb[0].mxu0 %v246
    %v336 = vpop.f32.mrb[0].mxu0
    %v337 = vadd.f32 %v268, %v336
    %v338 = vpop.f32.mrb[0].mxu0
    %339 = vdwg.mxu0
    %vm340 = vcmp.gt.f32.partialorder %v337, 0.0
    %v341 = vmul.f32 %v337, 0.01
    %v342 = vsel %vm340, %v337, %v341
    %343 = vst [vmem:[#allocation3] sm:$0xff] %v342
    %v344 = vld [vmem:[#allocation5] sm:$0xff]
    %v345 = vld [vmem:[#allocation5 + $0x8] sm:$0xff]
    %v346 = vmul.f32 %v342, %v342
    %347 = vmatprep.subr.mxu0 %v346
    %348 = vmatpush1.msra.mxu0 %v342
    %349 = vmatprep.subr.mxu0 0.0
    %350 = vmatpush1.msra.mxu0 0.0
    %351 = vmatprep.subr.mxu0 0.0
    %352 = vmatpush1.msra.mxu0 0.0
    %353 = vmatprep.subr.mxu0 0.0
    %354 = vmatpush1.msra.mxu0 0.0
    %355 = vmatprep.subr.mxu0 0.0
    %356 = vmatpush1.msra.mxu0 0.0
    %357 = vmatprep.subr.mxu0 0.0
    %358 = vmatpush1.msra.mxu0 0.0
    %359 = vmatprep.subr.mxu0 0.0
    %360 = vmatpush1.msra.mxu0 0.0
    %361 = vmatprep.subr.mxu0 0.0
    %362 = vmatpush1.msra.mxu0 0.0
    %363 = vmatprep.subr.mxu0 0.0
    %364 = vmatpush1.msra.mxu0 0.0
    %365 = vmatprep.subr.mxu0 0.0
    %366 = vmatpush1.msra.mxu0 0.0
    %367 = vmatprep.subr.mxu0 0.0
    %368 = vmatpush1.msra.mxu0 0.0
    %369 = vmatprep.subr.mxu0 0.0
    %370 = vmatpush1.msra.mxu0 0.0
    %371 = vmatprep.subr.mxu0 0.0
    %372 = vmatpush1.msra.mxu0 0.0
    %373 = vmatprep.subr.mxu0 0.0
    %374 = vmatpush1.msra.mxu0 0.0
    %375 = vmatprep.subr.mxu0 0.0
    %376 = vmatpush1.msra.mxu0 0.0
    %377 = vmatprep.subr.mxu0 0.0
    %378 = vmatpush1.msra.mxu0 0.0
    %379 = vmatprep.subr.mxu0 0.0
    %380 = vmatpush1.msra.mxu0 0.0
    %381 = vmatprep.subr.mxu0 0.0
    %382 = vmatpush1.msra.mxu0 0.0
    %383 = vmatprep.subr.mxu0 0.0
    %384 = vmatpush1.msra.mxu0 0.0
    %385 = vmatprep.subr.mxu0 0.0
    %386 = vmatpush1.msra.mxu0 0.0
    %387 = vmatprep.subr.mxu0 0.0
    %388 = vmatpush1.msra.mxu0 0.0
    %389 = vmatprep.subr.mxu0 0.0
    %390 = vmatpush1.msra.mxu0 0.0
    %391 = vmatprep.subr.mxu0 0.0
    %392 = vmatpush1.msra.mxu0 0.0
    %393 = vmatprep.subr.mxu0 0.0
    %394 = vmatpush1.msra.mxu0 0.0
    %395 = vmatprep.subr.mxu0 0.0
    %396 = vmatpush1.msra.mxu0 0.0
    %397 = vmatprep.subr.mxu0 0.0
    %398 = vmatpush1.msra.mxu0 0.0
    %399 = vmatprep.subr.mxu0 0.0
    %400 = vmatpush1.msra.mxu0 0.0
    %401 = vmatprep.subr.mxu0 0.0
    %402 = vmatpush1.msra.mxu0 0.0
    %403 = vmatprep.subr.mxu0 0.0
    %404 = vmatpush1.msra.mxu0 0.0
    %405 = vmatprep.subr.mxu0 0.0
    %406 = vmatpush1.msra.mxu0 0.0
    %407 = vmatprep.subr.mxu0 0.0
    %408 = vmatpush1.msra.mxu0 0.0
    %409 = vmatprep.subr.mxu0 0.0
    %410 = vmatpush1.msra.mxu0 0.0
    %411 = vmatprep.mubr.f32.mxu0 0.0
    %412 = vmatmul.mubr.f32.gmra.mrb[0].mxu0 %v143
    %v413 = vpop.f32.mrb[0].mxu0
    %v414 = vadd.f32 0.0, %v413
    %v415 = vpop.f32.mrb[0].mxu0
    %v416 = vadd.f32 0.0, %v415
    %417 = vdwg.mxu0
    %v418 = vadd.f32 %v344, %v414
    %v419 = vadd.f32 %v345, %v416
    %420 = vst [vmem:[#allocation5] sm:$0xff] %v418
    %421 = vst [vmem:[#allocation5 + $0x8] sm:$0xff] %v419
    %v422 = vld [vmem:[#allocation5] sm:$0xff]
    %v423 = vld [vmem:[#allocation5 + $0x8] sm:$0xff]
    %v424 = vld [vmem:[%s5] sm:$0x3]
    %v425 = vmul.f32 %v422, 0.125
    %v426 = vmul.f32 %v423, 0.125
    %v427 = vmul.f32 %v425, %v425
    %v428 = vsub.f32 %v426, %v427
    %v429 = vmax.f32 %v428, 0.0
    %v430 = vadd.f32 %v429, 1e-05
    %v431 = vrsqrt.pop %v430
    %v432 = vmul.f32 %v424, %v431
    %v433 = vmul.f32 %v425, %v432
    %v435 = vrot.slane %v433, 7
    %v437 = vsub.f32 %v424, %v435
    %v438 = vld [vmem:[#allocation3] sm:$0xff]
    %v439 = vlaneseq
    %v440 = vshrl.u32 %v439, 7
    %v441 = vsub.s32 0, %v440
    %v442 = vrot.slane %v432, %v441
    %v443 = vmul.f32 %v438, %v442
    %v444 = vlaneseq
    %v445 = vshrl.u32 %v444, 7
    %v446 = vsub.s32 1, %v445
    %v447 = vrot.slane %v437, %v446
    %v448 = vadd.f32 %v443, %v447
    %vm449 = vcmask 261120
    %450 = vst.msk [vmem:[#allocation6] sm:$0xff] %vm449, %v448
    // Predicated region
    $region26: #{category_encoder_forward.1} parent=1 // pred_check
      _
    $region27: #{category_encoder_forward.1} parent=1 // pred_check_branch
      %452 = sbr.rel (0) target = $region29
    $region28: #{category_encoder_forward.1} parent=1 // pred_region
      %s454 = ssub.s32 128, 128
      %455 = vsyncadd [#allocation7], %s454
      %s457 = sshll.u32 [#allocation6], 4
      %s458 = int_to_ptr.vmem [resolvable:$true] %s457
      %460 = dma.vmem_to_hbm [thread:$0]  %s458, 128, %s6, [#allocation7]
    $region29: #{category_encoder_forward.1} parent=1 // pred_fallthru
      _
    // Predicated region
    $region30: #{category_encoder_forward.1} parent=1 // pred_check
      _
    $region31: #{category_encoder_forward.1} parent=1 // pred_check_branch
      %462 = sbr.rel (0) target = $region33
    $region32: #{category_encoder_forward.1} parent=1 // pred_region
      %463 = dma.done [#allocation7], 128
    $region33: #{category_encoder_forward.1} parent=1 // pred_fallthru
      _
    %464 = vsyncpa [#allocation7], 1

</llo_original>
